<compile_context>
chip_gen: v5e
topology: v5e:2x2
jax: 0.10.0
libtpu: 0.0.40
codegen_flags: <defaults>
</compile_context>

<pallas_src>
import jax
import jax.numpy as jnp
from jax.experimental import pallas as pl
from jax.experimental.pallas import tpu as pltpu


def _ode_kernel(gamma_ref, p_ref, o_ref):
    # gamma_ref: (1, 1) scalar in SMEM ; p_ref / o_ref: (tile_rows, 128) in VMEM
    g = gamma_ref[0, 0]
    p = p_ref[...].astype(jnp.float32)   # compute in f32 (safe on v5e/v6e/v7x)
    s = jnp.sin(p + g)                   # sin -> EUP slot; mul/add -> VALU
    o_ref[...] = (-p + s * s).astype(o_ref.dtype)


def neural_ode_forward(t, p, gamma):
    """Pallas implementation of neuralODE.forward(t, p) with self.gamma = gamma.

    `t` is unused (as in the PyTorch module). `p` may be any shape.
    """
    del t  # unused, kept for signature parity with the torch module
    orig_shape = p.shape
    orig_dtype = p.dtype

    LANES = 128
    SUBLANES = 8
    MAX_TILE_ROWS = 2048  # 1 MiB per f32 buffer -> ~4 MiB double-buffered in+out

    # Keep HBM I/O in the caller's (narrow) float dtype; only non-float inputs
    # get promoted. Compute happens in f32 inside the kernel.
    io_dtype = orig_dtype if jnp.issubdtype(orig_dtype, jnp.floating) else jnp.float32
    x = p.astype(io_dtype)

    total = x.size
    flat = x.reshape(-1)
    pad = (-total) % LANES
    if pad:  # only when the flat length isn't already lane-aligned
        flat = jnp.pad(flat, (0, pad))
    rows = flat.size // LANES
    slab = flat.reshape(rows, LANES)

    # Tile selection: as large as possible to amortize per-step overhead, capped
    # well below every generation's scoped-VMEM default, and (when there is
    # enough data) keeping grid >= 2 so v7x megacore can split grid steps.
    if rows <= SUBLANES:
        tile_rows = rows  # block == full array dims (valid even if < 8 rows)
    else:
        half = -(-rows // 2)
        tile_rows = max(SUBLANES,
                        min(MAX_TILE_ROWS, -(-half // SUBLANES) * SUBLANES))
    grid = (pl.cdiv(rows, tile_rows),)

    gamma_arr = jnp.asarray(gamma, jnp.float32).reshape(1, 1)

    out_slab = pl.pallas_call(
        _ode_kernel,
        out_shape=jax.ShapeDtypeStruct((rows, LANES), io_dtype),
        grid_spec=pltpu.PrefetchScalarGridSpec(
            num_scalar_prefetch=0,
            grid=grid,
            in_specs=[
                pl.BlockSpec(memory_space=pltpu.MemorySpace.SMEM),   # gamma scalar
                pl.BlockSpec((tile_rows, LANES), lambda i: (i, 0)),  # p tile
            ],
            out_specs=pl.BlockSpec((tile_rows, LANES), lambda i: (i, 0)),
        ),
        compiler_params=pltpu.CompilerParams(
            dimension_semantics=("parallel",),
        ),
    )(gamma_arr, slab)

    out_flat = out_slab.reshape(-1)
    if pad:
        out_flat = out_flat[:total]
    return out_flat.reshape(orig_shape).astype(orig_dtype)


def _reference(t, p, gamma):
    # Pure-JAX reference mirroring the PyTorch forward exactly.
    return -p + jnp.sin(p + gamma) ** 2


if __name__ == "__main__":
    key = jax.random.PRNGKey(0)
    kp, kg = jax.random.split(key)

    # Small shapes consistent with an ODE state tensor (NCHW-style).
    B, C, H, W = 2, 4, 16, 16
    p = jax.random.normal(kp, (B, C, H, W), dtype=jnp.float32)
    gamma = float(jax.random.normal(kg, ()))  # self.gamma set via fresh(gamma)
    t = jnp.float32(0.0)                      # unused by the forward pass

    out = neural_ode_forward(t, p, gamma)
    out = jax.block_until_ready(out)

    ref = _reference(t, p, gamma)
    assert out.shape == p.shape and out.dtype == p.dtype
    assert jnp.allclose(out, ref, atol=1e-5, rtol=1e-5), "mismatch vs reference"

    print("KERNEL_OK")
</pallas_src>

<mosaic_0001>
module attributes {stable_mosaic.version = 11 : i64} {
  func.func @_ode_kernel(%arg0: i32, %arg1: memref<1x1xf32, #tpu.memory_space<smem>>, %arg2: memref<8x128xf32, #tpu.memory_space<vmem>>, %arg3: memref<8x128xf32, #tpu.memory_space<vmem>>) attributes {dimension_semantics = [#tpu.dimension_semantics<parallel>], iteration_bounds = array<i64: 2>, scalar_prefetch = 0 : i64, scratch_operands = 0 : i64, tpu.core_type = #tpu.core_type<tc>, window_params = [{transform_indices = @transform_0, window_bounds = array<i64: 1, 1>}, {transform_indices = @transform_1, window_bounds = array<i64: 8, 128>}, {transform_indices = @transform_2, window_bounds = array<i64: 8, 128>}]} {
    %c0 = arith.constant 0 : index
    %c0_0 = arith.constant 0 : index
    %0 = memref.load %arg1[%c0, %c0_0] : memref<1x1xf32, #tpu.memory_space<smem>>
    %c0_1 = arith.constant 0 : index
    %c0_2 = arith.constant 0 : index
    %1 = vector.load %arg2[%c0_1, %c0_2] : memref<8x128xf32, #tpu.memory_space<vmem>>, vector<8x128xf32>
    %2 = vector.broadcast %0 : f32 to vector<8x128xf32>
    %3 = arith.addf %1, %2 : vector<8x128xf32>
    %4 = math.sin %3 : vector<8x128xf32>
    %cst = arith.constant 0.000000e+00 : f32
    %5 = vector.broadcast %cst : f32 to vector<8x128xf32>
    %6 = arith.subf %5, %1 : vector<8x128xf32>
    %7 = arith.mulf %4, %4 : vector<8x128xf32>
    %8 = arith.addf %6, %7 : vector<8x128xf32>
    %c0_3 = arith.constant 0 : index
    %c0_4 = arith.constant 0 : index
    %9 = vector.load %arg3[%c0_3, %c0_4] : memref<8x128xf32, #tpu.memory_space<vmem>>, vector<8x128xf32>
    tpu.vector_store %arg3[%c0_3, %c0_4], %8 {strides = array<i32>} : memref<8x128xf32, #tpu.memory_space<vmem>>, vector<8x128xf32>,
    return
  }
  func.func @transform_0(%arg0: i32) -> (i32, i32) {
    %c0_i32 = arith.constant 0 : i32
    %c0_i32_0 = arith.constant 0 : i32
    %c0_i32_1 = arith.constant 0 : i32
    return %c0_i32, %c0_i32_0 : i32, i32
  }
  func.func @transform_1(%arg0: i32) -> (i32, i32) {
    %c0_i32 = arith.constant 0 : i32
    %c0_i32_0 = arith.constant 0 : i32
    return %arg0, %c0_i32 : i32, i32
  }
  func.func @transform_2(%arg0: i32) -> (i32, i32) {
    %c0_i32 = arith.constant 0 : i32
    %c0_i32_0 = arith.constant 0 : i32
    return %arg0, %c0_i32 : i32, i32
  }
}

</mosaic_0001>

<llo_original>
// kernel: tpu_custom_call.1
$region0: #{tpu_custom_call.1}
  #allocation0 [shape = 'u32[]', space=smem, size = 0x4, offset = 0x4, fixed_abs, tag = 'smem constant byte address 0x4 - core index']
  #allocation1 [shape = 'u32[72,128]{1,0:T(1,128)}', space=vmem, size = 0x9000, scoped, tag = 'internal scratch']
  #allocation2 [shape = 'f32[1,1]{1,0:T(1,128)S(6)}', space=smem, size = 0x200, scoped, tag = 'scoped memory for tpu_custom_call.1']
  %s0 = inlined_call_operand.<no memory space> [shape: f32[1,1], index: 0, kind: input, shape index: {}]
  %s1 = inlined_call_operand.hbm [shape: f32[16,128], index: 1, kind: input, shape index: {}]
  %s2 = inlined_call_operand.hbm [shape: f32[16,128], index: 2, kind: output, shape index: {}]
  %s3 = sld [smem:[#allocation0]]
  $region45: #{tpu_custom_call.1} parent=0
    _
  %s5 = ssub.s32 1, %s3
  %s6 = scalar_select 0, %s5, %s3
  %7 = sst [smem:[#allocation2]] %s0
  $region1: #{tpu_custom_call.1} parent=0
    #allocation3 [shape = 'u8[8192]{0}', space=vmem, size = 0x2000, scoped, tag = 'input window, operand 1']
    #allocation4 [shape = 's32[2]{0}', space=sflag, size = 0x8, scoped, tag = 'scoped memory for tpu_custom_call.1']
    #allocation5 [shape = 's32[2]{0}', space=sflag, size = 0x8, scoped, tag = 'scoped memory for tpu_custom_call.1']
    #allocation6 [shape = 'u8[8192]{0}', space=vmem, size = 0x2000, scoped, tag = 'output window, operand 0']
    %8 = vsyncpa [#allocation4], 0
    %s9 = scalar_lea.sflag [#allocation4], 1
    %10 = vsyncpa %s9, 0
    %11 = vsyncpa [#allocation5], 0
    %s12 = scalar_lea.sflag [#allocation5], 1
    %13 = vsyncpa %s12, 0
    loop: start=0, step=1, limit=4
    $region2: #{tpu_custom_call.1} parent=1 // loop_pre_header
      _
    $region3: #{tpu_custom_call.1} parent=1 // loop_header
      %s15 = sphi 0, %s19
      %p16 = scmp.ge.s32.totalorder %s15, 4
      %s23 = sphi 0, %s23
      %s25 = sphi 0, %s23
      %s26 = sphi 0, %s25
      %s40 = sphi 0, %s26
      %s46 = sphi 0, %s48
      %s49 = sphi 0, %s46
      %s50 = sphi 0, %s49
      %s66 = sphi 0, %s50
      %s72 = sphi 0, %s74
      %s75 = sphi 0, %s72
      %s76 = sphi 0, %s75
      %s92 = sphi 0, %s76
    $region4: #{tpu_custom_call.1} parent=1 // loop_header_branch
      %18 = sbr.rel (%p16) target = $region8
    $region5: #{tpu_custom_call.1} parent=1 // loop_body
      %s20 = ssub.s32 %s15, 1
      %s21 = ssub.s32 %s15, 2
      %s22 = sadd.s32 %s15, 1
      %s24 = sadd.s32 %s23, 1
      %p27 = scmp.eq.s32.totalorder %s15, 1
      %p28 = scmp.ne.s32.totalorder %s23, %s25
      %p29 = scmp.eq.s32.totalorder %s15, 0
      %p30 = por %p28, %p29
      %p31 = scmp.ne.s32.totalorder %s23, %s25
      %p32 = scmp.eq.s32.totalorder %s20, 1
      %p33 = por %p31, %p32
      %p34 = scmp.ne.s32.totalorder %s25, %s26
      %p35 = scmp.eq.s32.totalorder %s20, 0
      %p36 = por %p34, %p35
      %p37 = scmp.ne.s32.totalorder %s25, %s26
      %p38 = scmp.eq.s32.totalorder %s21, 1
      %p39 = por %p37, %p38
      %p41 = scmp.ne.s32.totalorder %s26, %s40
      %p42 = scmp.eq.s32.totalorder %s21, 0
      %p43 = por %p41, %p42
      %s44 = ssub.s32 %s15, %s22
      %p45 = scmp.eq.s32.totalorder %s44, 0
      %s47 = sadd.s32 %s46, 1
      %s48 = scalar_select %p45, %s46, %s47
      %p51 = pneg %p45
      %p52 = scmp.eq.s32.totalorder %s15, 1
      %p53 = por %p51, %p52
      %p54 = scmp.ne.s32.totalorder %s46, %s49
      %p55 = scmp.eq.s32.totalorder %s15, 0
      %p56 = por %p54, %p55
      %p57 = scmp.ne.s32.totalorder %s46, %s49
      %p58 = scmp.eq.s32.totalorder %s20, 1
      %p59 = por %p57, %p58
      %p60 = scmp.ne.s32.totalorder %s49, %s50
      %p61 = scmp.eq.s32.totalorder %s20, 0
      %p62 = por %p60, %p61
      %p63 = scmp.ne.s32.totalorder %s49, %s50
      %p64 = scmp.eq.s32.totalorder %s21, 1
      %p65 = por %p63, %p64
      %p67 = scmp.ne.s32.totalorder %s50, %s66
      %p68 = scmp.eq.s32.totalorder %s21, 0
      %p69 = por %p67, %p68
      %s70 = ssub.s32 %s15, %s22
      %p71 = scmp.eq.s32.totalorder %s70, 0
      %s73 = sadd.s32 %s72, 1
      %s74 = scalar_select %p71, %s72, %s73
      %p77 = pneg %p71
      %p78 = scmp.eq.s32.totalorder %s15, 1
      %p79 = por %p77, %p78
      %p80 = scmp.ne.s32.totalorder %s72, %s75
      %p81 = scmp.eq.s32.totalorder %s15, 0
      %p82 = por %p80, %p81
      %p83 = scmp.ne.s32.totalorder %s72, %s75
      %p84 = scmp.eq.s32.totalorder %s20, 1
      %p85 = por %p83, %p84
      %p86 = scmp.ne.s32.totalorder %s75, %s76
      %p87 = scmp.eq.s32.totalorder %s20, 0
      %p88 = por %p86, %p87
      %p89 = scmp.ne.s32.totalorder %s75, %s76
      %p90 = scmp.eq.s32.totalorder %s21, 1
      %p91 = por %p89, %p90
      %p93 = scmp.ne.s32.totalorder %s76, %s92
      %p94 = scmp.eq.s32.totalorder %s21, 0
      %p95 = por %p93, %p94
      %p96 = scmp.le.s32.totalorder 1, %s15
      %p97 = scmp.lt.s32.totalorder %s15, 3
      %p98 = pnand %p96, %p97
      %p99 = pneg %p98
      // Predicated region
      $region9: #{tpu_custom_call.1} parent=5 // pred_check
        _
      $region10: #{tpu_custom_call.1} parent=5 // pred_check_branch
        %101 = sbr.rel (%p98) target = $region12
      $region11: #{tpu_custom_call.1} parent=5 // pred_region
        %s102 = ssub.s32 %s15, 1
        // Predicated region
        $region13: #{tpu_custom_call.1} parent=11 // pred_check
          %p103 = pneg %p36
        $region14: #{tpu_custom_call.1} parent=11 // pred_check_branch
          %105 = sbr.rel (%p103) target = $region16
        $region15: #{tpu_custom_call.1} parent=11 // pred_region
          _
        $region16: #{tpu_custom_call.1} parent=11 // pred_fallthru
          _
      $region12: #{tpu_custom_call.1} parent=5 // pred_fallthru
        _
      %p106 = scmp.lt.s32.totalorder %s15, 2
      // Predicated region
      $region17: #{tpu_custom_call.1} parent=5 // pred_check
        %p107 = pneg %p106
      $region18: #{tpu_custom_call.1} parent=5 // pred_check_branch
        %109 = sbr.rel (%p107) target = $region20
      $region19: #{tpu_custom_call.1} parent=5 // pred_region
        // Predicated region
        $region21: #{tpu_custom_call.1} parent=19 // pred_check
          %p110 = pneg %p56
        $region22: #{tpu_custom_call.1} parent=19 // pred_check_branch
          %112 = sbr.rel (%p110) target = $region24
        $region23: #{tpu_custom_call.1} parent=19 // pred_region
          %s113 = sand.u32 %s46, 1
          %s114 = scalar_lea.sflag [#allocation4], %s113
          %s115 = sand.u32 %s46, 1
          %s116 = smul.addr %s115, 8
          %s117 = scalar_lea.vmem [#allocation3], %s116
          %119 = vsyncadd %s114, 0
          %s120 = smul.addr %s15, 8
          %s121 = scalar_lea.hbm %s1, %s120
          %s123 = sshll.u32 %s121, 4
          %s124 = int_to_ptr.hbm [resolvable:$true] %s123
          %s125 = sshll.u32 %s117, 4
          %s126 = int_to_ptr.vmem [resolvable:$true] %s125
          %128 = dma.hbm_to_vmem [thread:$0]  %s124, 128, %s126, %s114
        $region24: #{tpu_custom_call.1} parent=19 // pred_fallthru
          _
      $region20: #{tpu_custom_call.1} parent=5 // pred_fallthru
        _
      %p129 = scmp.le.s32.totalorder 1, %s15
      %p130 = scmp.lt.s32.totalorder %s15, 3
      %p131 = pnand %p129, %p130
      %p132 = pneg %p131
      // Predicated region
      $region25: #{tpu_custom_call.1} parent=5 // pred_check
        _
      $region26: #{tpu_custom_call.1} parent=5 // pred_check_branch
        %134 = sbr.rel (%p131) target = $region28
      $region27: #{tpu_custom_call.1} parent=5 // pred_region
        %s135 = ssub.s32 %s15, 1
        %s136 = sand.u32 %s49, 1
        %s137 = scalar_lea.sflag [#allocation4], %s136
        %s138 = sand.u32 %s49, 1
        %s139 = smul.addr %s138, 8
        %s140 = scalar_lea.vmem [#allocation3], %s139
        // Predicated region
        $region29: #{tpu_custom_call.1} parent=27 // pred_check
          %p141 = pneg %p62
        $region30: #{tpu_custom_call.1} parent=27 // pred_check_branch
          %143 = sbr.rel (%p141) target = $region32
        $region31: #{tpu_custom_call.1} parent=27 // pred_region
          %145 = dma.done %s137, 128
        $region32: #{tpu_custom_call.1} parent=27 // pred_fallthru
          _
        %p146 = pneg %p36
        %p147 = pneg %p33
        %s148 = sand.u32 %s49, 1
        %s149 = scalar_lea.sflag [#allocation4], %s148
        %s150 = sand.u32 %s49, 1
        %s151 = smul.addr %s150, 8
        %s152 = scalar_lea.vmem [#allocation3], %s151
        %p153 = pneg %p62
        %p154 = pneg %p59
        %p155 = pneg %p88
        %p156 = pneg %p85
        %s157 = sand.u32 %s75, 1
        %s158 = scalar_lea.sflag [#allocation5], %s157
        %s159 = sand.u32 %s75, 1
        %s160 = smul.addr %s159, 8
        %s161 = scalar_lea.vmem [#allocation6], %s160
        %s162 = sld [smem:[#allocation2]]
        %v163 = vld [vmem:[%s140] sm:$0xff]
        %v164 = vstv %s162
        %v165 = vadd.f32 %v163, %v164
        %v166 = vand.u32 2147483647, %v165
        %vm167 = vcmp.le.f32.partialorder %v166, 0.7853982
        %vm168 = vcmp.lt.s32.totalorder %v165, 0
        %v169 = vand.u32 %v165, 2139095040
        %v170 = vshrl.u32 %v169, 23
        %v171 = vsub.s32 %v170, 127
        %v172 = vand.u32 2147483647, %v165
        %v173 = vand.u32 %v172, 8388607
        %v174 = vor.u32 %v173, 8388608
        %v175 = vsub.s32 0, %v174
        %v176 = vadd.s32 %v171, 1
        %vm177 = vcmp.gt.s32.totalorder %v176, 0
        %v178 = vsel %vm177, %v176, 0
        %v179 = vshrl.u32 %v178, 5
        %v180 = vand.u32 %v178, 31
        %v181 = vsub.s32 32, %v180
        %v182 = vshrl.u32 683565275, %v181
        %v183 = vshll.u32 683565275, %v180
        %v184 = vshrl.u32 2475754826, %v181
        %v185 = vor.u32 %v183, %v184
        %v186 = vshll.u32 2475754826, %v180
        %v187 = vshrl.u32 2131351028, %v181
        %v188 = vor.u32 %v186, %v187
        %v189 = vshll.u32 2131351028, %v180
        %v190 = vshrl.u32 2102212464, %v181
        %v191 = vor.u32 %v189, %v190
        %v192 = vshll.u32 2102212464, %v180
        %v193 = vshrl.u32 920167782, %v181
        %v194 = vor.u32 %v192, %v193
        %v195 = vshll.u32 920167782, %v180
        %v196 = vshrl.u32 1326507024, %v181
        %v197 = vor.u32 %v195, %v196
        %vm198 = vcmp.lt.s32.totalorder %v179, 1
        %vm199 = vcmp.lt.s32.totalorder %v179, 2
        %vm200 = vcmp.lt.s32.totalorder %v179, 3
        %vm201 = vcmp.lt.s32.totalorder %v179, 4
        %v202 = vsel %vm198, %v182, %v185
        %v203 = vsel %vm201, %v191, 2102212464
        %v204 = vsel %vm200, %v188, %v203
        %v205 = vsel %vm199, %v202, %v204
        %v206 = vsel %vm198, %v185, %v188
        %v207 = vsel %vm201, %v194, 920167782
        %v208 = vsel %vm200, %v191, %v207
        %v209 = vsel %vm199, %v206, %v208
        %v210 = vsel %vm198, %v188, %v191
        %v211 = vsel %vm201, %v197, 1326507024
        %v212 = vsel %vm200, %v194, %v211
        %v213 = vsel %vm199, %v210, %v212
        %v214 = vshll.u32 %v174, 8
        %v215 = vand.u32 %v214, 65535
        %v216 = vshrl.u32 %v214, 16
        %v217 = vand.u32 %v213, 65535
        %v218 = vshrl.u32 %v213, 16
        %v219 = vmul.u32 %v215, %v217
        %v220 = vmul.u32 %v215, %v218
        %v221 = vmul.u32 %v216, %v217
        %v222 = vmul.u32 %v216, %v218
        %v223 = vshll.u32 %v220, 16
        %v224 = vshrl.u32 %v220, 16
        %v225 = vshll.u32 %v221, 16
        %v226 = vshrl.u32 %v221, 16
        %vm227 = vc.u32 %v219, %v223
        %v228 = vsel %vm227, 1, 0
        %v229 = vadd.s32 %v219, %v223
        %v230 = vadd.s32 %v222, %v228
        %vm231 = vc.u32 %v229, %v225
        %v232 = vsel %vm231, 1, 0
        %v233 = vadd.s32 %v229, %v225
        %v234 = vadd.s32 %v230, %v232
        %v235 = vadd.s32 %v234, %v224
        %v236 = vadd.s32 %v235, %v226
        %v237 = vand.u32 %v214, 65535
        %v238 = vshrl.u32 %v214, 16
        %v239 = vand.u32 %v209, 65535
        %v240 = vshrl.u32 %v209, 16
        %v241 = vmul.u32 %v237, %v239
        %v242 = vmul.u32 %v237, %v240
        %v243 = vmul.u32 %v238, %v239
        %v244 = vmul.u32 %v238, %v240
        %v245 = vshll.u32 %v242, 16
        %v246 = vshrl.u32 %v242, 16
        %v247 = vshll.u32 %v243, 16
        %v248 = vshrl.u32 %v243, 16
        %vm249 = vc.u32 %v241, %v245
        %v250 = vsel %vm249, 1, 0
        %v251 = vadd.s32 %v241, %v245
        %v252 = vadd.s32 %v244, %v250
        %vm253 = vc.u32 %v251, %v247
        %v254 = vsel %vm253, 1, 0
        %v255 = vadd.s32 %v251, %v247
        %v256 = vadd.s32 %v252, %v254
        %v257 = vadd.s32 %v256, %v246
        %v258 = vadd.s32 %v257, %v248
        %v259 = vmul.u32 %v214, %v205
        %v260 = vadd.s32 %v236, %v255
        %vm261 = vc.u32 %v236, %v255
        %v262 = vadd.s32 %v258, 1
        %v263 = vsel %vm261, %v262, %v258
        %v264 = vadd.s32 %v259, %v263
        %v265 = vadd.s32 %v264, 536870912
        %v266 = vshrl.u32 %v265, 30
        %v267 = vshll.u32 %v266, 30
        %v268 = vsub.s32 %v264, %v267
        %vm269 = vcmp.lt.s32.totalorder %v268, 0
        %v270 = vsub.s32 0, %v268
        %v271 = vsel %vm269, %v270, %v268
        %v272 = vclz %v271
        %v273 = vsub.s32 %v272, 2
        %vm274 = vcmp.gt.s32.totalorder 0, %v273
        %v275 = vsel %vm274, 0, %v273
        %v276 = vsub.s32 32, %v275
        %v277 = vshll.u32 %v268, %v275
        %v278 = vshrl.u32 %v260, %v276
        %v279 = vor.u32 %v277, %v278
        %v280 = vsub.s32 4294967266, %v275
        %v281 = vadd.s32 %v280, 127
        %v282 = vshll.u32 %v281, 23
        %v283 = vor.u32 4788187, %v282
        %v284 = vand.u32 2147483647, %v283
        %v286 = vcvt.s32.f32 %v279
        %v287 = vmul.f32 %v286, %v284
        %v288 = vxor.u32 %v287, 2147483648
        %v289 = vsel %vm168, %v288, %v287
        %v290 = vsub.s32 4, %v266
        %v291 = vsel %vm168, %v290, %v266
        %v292 = vsel %vm167, %v165, %v289
        %v293 = vsel %vm167, 0, %v291
        %v294 = vmul.f32 %v292, %v292
        %v295 = vmul.f32 %v294, -0.001358992
        %v296 = vadd.f32 %v295, 0.041655596
        %v297 = vmul.f32 %v294, %v296
        %v298 = vadd.f32 %v297, -0.4999988
        %v299 = vmul.f32 %v294, %v298
        %v300 = vadd.f32 1.0, %v299
        %v301 = vmul.f32 %v292, %v292
        %v302 = vmul.f32 %v301, -0.00019511016
        %v303 = vadd.f32 %v302, 0.008332121
        %v304 = vmul.f32 %v301, %v303
        %v305 = vadd.f32 %v304, -0.16666654
        %v306 = vmul.f32 %v301, %v305
        %v307 = vadd.f32 %v306, 1.0
        %v308 = vmul.f32 %v307, %v292
        %vm309 = vweird.f32 %v165
        %v310 = vadd.s32 %v293, 3
        %v311 = vand.u32 %v310, 3
        %vm312 = vcmp.lt.s32.totalorder %v311, 2
        %vm313 = vcmp.eq.s32.totalorder %v311, 0
        %v314 = vxor.u32 %v308, 2147483648
        %v315 = vsel %vm313, %v300, %v314
        %vm316 = vcmp.eq.s32.totalorder %v311, 2
        %v317 = vxor.u32 %v300, 2147483648
        %v318 = vsel %vm316, %v317, %v308
        %v319 = vsel %vm312, %v315, %v318
        %v320 = vsel %vm309, nan, %v319
        %v321 = vsub.f32 0.0, %v163
        %v322 = vmul.f32 %v320, %v320
        %v323 = vadd.f32 %v321, %v322
        %324 = vst [vmem:[%s161] sm:$0xff] %v323
        %s325 = sand.u32 %s75, 1
        %s326 = scalar_lea.sflag [#allocation5], %s325
        %s327 = sand.u32 %s75, 1
        %s328 = smul.addr %s327, 8
        %s329 = scalar_lea.vmem [#allocation6], %s328
        // Predicated region
        $region33: #{tpu_custom_call.1} parent=27 // pred_check
          %p330 = pneg %p85
        $region34: #{tpu_custom_call.1} parent=27 // pred_check_branch
          %332 = sbr.rel (%p330) target = $region36
        $region35: #{tpu_custom_call.1} parent=27 // pred_region
          %334 = vsyncadd %s326, 0
          %s335 = smul.addr %s20, 8
          %s336 = scalar_lea.hbm %s2, %s335
          %s338 = sshll.u32 %s329, 4
          %s339 = int_to_ptr.vmem [resolvable:$true] %s338
          %s340 = sshll.u32 %s336, 4
          %s341 = int_to_ptr.hbm [resolvable:$true] %s340
          %343 = dma.vmem_to_hbm [thread:$0]  %s339, 128, %s341, %s326
        $region36: #{tpu_custom_call.1} parent=27 // pred_fallthru
          _
      $region28: #{tpu_custom_call.1} parent=5 // pred_fallthru
        _
      %p344 = scmp.le.s32.totalorder 2, %s15
      // Predicated region
      $region37: #{tpu_custom_call.1} parent=5 // pred_check
        %p345 = pneg %p344
      $region38: #{tpu_custom_call.1} parent=5 // pred_check_branch
        %347 = sbr.rel (%p345) target = $region40
      $region39: #{tpu_custom_call.1} parent=5 // pred_region
        %s348 = ssub.s32 %s15, 2
        // Predicated region
        $region41: #{tpu_custom_call.1} parent=39 // pred_check
          %p349 = pneg %p91
        $region42: #{tpu_custom_call.1} parent=39 // pred_check_branch
          %351 = sbr.rel (%p349) target = $region44
        $region43: #{tpu_custom_call.1} parent=39 // pred_region
          %s352 = sand.u32 %s76, 1
          %s353 = scalar_lea.sflag [#allocation5], %s352
          %s354 = sand.u32 %s76, 1
          %s355 = smul.addr %s354, 8
          %s356 = scalar_lea.vmem [#allocation6], %s355
          %358 = dma.done %s353, 128
        $region44: #{tpu_custom_call.1} parent=39 // pred_fallthru
          _
      $region40: #{tpu_custom_call.1} parent=5 // pred_fallthru
        _
    $region6: #{tpu_custom_call.1} parent=1 // loop_footer
      %s19 = sadd.s32 1, %s15
    $region7: #{tpu_custom_call.1} parent=1 // loop_footer_branch
      %14 = sbr.rel target = $region3
    $region8: #{tpu_custom_call.1} parent=1 // loop_exit
      _
    %359 = vsyncpa [#allocation4], 1
    %s360 = scalar_lea.sflag [#allocation4], 1
    %361 = vsyncpa %s360, 1
    %362 = vsyncpa [#allocation5], 1
    %s363 = scalar_lea.sflag [#allocation5], 1
    %364 = vsyncpa %s363, 1

</llo_original>
